<compile_context>
chip_gen: v5e
topology: v5e:2x2
jax: 0.10.0
libtpu: 0.0.40
codegen_flags: <defaults>
</compile_context>

<pallas_src>
import numpy as np
import jax
import jax.numpy as jnp
from jax.experimental import pallas as pl
from jax.experimental.pallas import tpu as pltpu

# ---------------- synthetic irregular geometry (ala CaloChallenge DS1) ----------------
LAY_R_EDGES = [
    [0.0, 5.0, 10.0, 30.0],             # layer 0: 3 r-bins, 1 alpha bin
    [0.0, 2.0, 5.0, 10.0, 15.0, 30.0],  # layer 1: 5 r-bins, 4 alpha bins
    [0.0, 10.0, 30.0],                  # layer 2: 2 r-bins, 4 alpha bins
]
LAY_ALPHAS = [1, 4, 4]
ALPHA_OUT = max(LAY_ALPHAS)
ALL_R_EDGES = np.unique(np.concatenate([np.asarray(e, np.float32) for e in LAY_R_EDGES]))
DIM_R_OUT = len(ALL_R_EDGES) - 1
ALL_R_AREAS = ALL_R_EDGES[1:] ** 2 - ALL_R_EDGES[:-1] ** 2
NUM_LAYERS = len(LAY_R_EDGES)
RDIMS = [len(e) - 1 for e in LAY_R_EDGES]
LAYER_BOUNDARIES = np.concatenate(
    [[0], np.cumsum([LAY_ALPHAS[i] * RDIMS[i] for i in range(NUM_LAYERS)])]
).astype(int)
N_VOX = int(LAYER_BOUNDARIES[-1])                 # 31 irregular input voxels
N_OUT = NUM_LAYERS * ALPHA_OUT * DIM_R_OUT        # 84 regular-grid outputs (true width)
EPS = 1e-5


def geom_weight_mats():
    """GeomConverter.weight_mats: area-fraction splitting matrices (dim_r_out, dim_in)."""
    mats = []
    for redges in LAY_R_EDGES:
        redges = np.asarray(redges, np.float32)
        dim_in = len(redges) - 1
        W = np.zeros((DIM_R_OUT, dim_in), np.float32)
        for ir in range(dim_in):
            s = int(np.nonzero(ALL_R_EDGES == redges[ir])[0][0])
            e = int(np.nonzero(ALL_R_EDGES == redges[ir + 1])[0][0])
            orig_area = redges[ir + 1] ** 2 - redges[ir] ** 2
            W[s:e, ir] = ALL_R_AREAS[s:e] / orig_area
        mats.append(W)
    return mats


def build_fused_weight(enc_weights):
    """Fold the 3 per-layer encoders + alpha replication into one (31, 84) weight.

    Output column index = (layer * ALPHA_OUT + alpha) * DIM_R_OUT + r_out.
    The alpha=1 layer bakes in `repeat_interleave(..., alpha_out) / alpha_out`
    by tiling its (scaled) weight across all alpha column blocks.
    Built once per weight update (weights are 31*84*4 B ~ 10 KB, VMEM-resident).
    """
    W = jnp.zeros((N_VOX, N_OUT), jnp.float32)
    for i in range(NUM_LAYERS):
        wt = enc_weights[i].T.astype(jnp.float32)                    # (rdim_i, DIM_R_OUT)
        if LAY_ALPHAS[i] == 1:
            blk = jnp.tile(wt / ALPHA_OUT, (1, ALPHA_OUT))           # (rdim_i, A*D)
        else:
            blk = jnp.kron(jnp.eye(ALPHA_OUT, dtype=wt.dtype), wt)   # (A*rdim_i, A*D)
        r0 = int(LAYER_BOUNDARIES[i])
        c0 = i * ALPHA_OUT * DIM_R_OUT
        W = W.at[r0:r0 + blk.shape[0], c0:c0 + blk.shape[1]].set(blk)
    return W


# ---------------------------- Pallas kernel (hot path) ----------------------------
def fused_enc_kernel(x_ref, w_ref, o_ref):
    # x: (TM, 31), w: (31, 84) resident across the grid, o: (TM, 84)
    o_ref[...] = jnp.dot(
        x_ref[...], w_ref[...], preferred_element_type=jnp.float32
    ).astype(o_ref.dtype)


def _pick_tm(B, *, tm_max=2048, target_grid=8, row_mult=8):
    """Row tile: multiple of `row_mult`, <= tm_max.

    For mid/large B the tile is shrunk so the grid keeps >= target_grid steps,
    letting dimension_semantics=("parallel",) shard across v7x's 2 TensorCores
    (no-op on single-TC v5e/v6e).  Tiny B collapses to one tile -- nothing to shard.
    """
    if B <= row_mult * target_grid:
        tm = min(B, tm_max)
    else:
        tm = min(tm_max, -(-B // target_grid))        # cdiv(B, target_grid)
    return row_mult * max(1, -(-tm // row_mult))      # round up to row_mult


def fused_enc_matmul(x, w_big, *, tm_max=2048, use_bf16=False):
    """x: (B, N_VOX) f32, w_big: (N_VOX, N_OUT) f32 -> (B, N_OUT) f32.

    No input padding / output slicing in the wrapper: Pallas masks the trailing
    partial row block on writeback, and the output is emitted at its true width.
    """
    B = x.shape[0]
    if use_bf16:
        # Halves the x HBM read; MXU still accumulates in f32 (weights stay f32).
        # Accuracy relaxes to ~1e-2 relative -- off by default.
        x = x.astype(jnp.bfloat16)
    row_mult = 16 if use_bf16 else 8                  # bf16 packs 2 rows / sublane
    tm = _pick_tm(B, tm_max=tm_max, row_mult=row_mult)
    grid = (pl.cdiv(B, tm),)

    cost = pl.CostEstimate(
        flops=2 * B * N_VOX * N_OUT,
        transcendentals=0,
        bytes_accessed=B * N_VOX * x.dtype.itemsize + N_VOX * N_OUT * 4 + B * N_OUT * 4,
    )

    return pl.pallas_call(
        fused_enc_kernel,
        out_shape=jax.ShapeDtypeStruct((B, N_OUT), jnp.float32),
        grid=grid,
        in_specs=[
            pl.BlockSpec((tm, N_VOX), lambda i: (i, 0)),
            # constant block index -> weight stays resident in VMEM, no re-DMA per step
            pl.BlockSpec((N_VOX, N_OUT), lambda i: (0, 0)),
        ],
        out_specs=pl.BlockSpec((tm, N_OUT), lambda i: (i, 0)),
        compiler_params=pltpu.CompilerParams(
            # shower tiles are independent -> shard across v7x's 2 TensorCores
            dimension_semantics=("parallel",),
        ),
        cost_estimate=cost,
    )(x, w_big)


# ------------------------------ NNConverter.enc (forward) ------------------------------
def nn_converter_enc(x, w_big, *, use_bf16=False):
    """x: (n_shower, n_vox) -> (n_shower, 1, num_layers, alpha_out, dim_r_out)."""
    B = x.shape[0]
    o = fused_enc_matmul(x, w_big, use_bf16=use_bf16)
    # (B, 84) -> (B, 1, 3, 4, 7): contiguous reshape, no slice copy.
    return o.reshape(B, NUM_LAYERS, ALPHA_OUT, DIM_R_OUT)[:, None]


def reference_enc(x, enc_weights):
    """Pure-JAX reference mirroring the torch module (reshape -> Linear -> repeat)."""
    B = x.shape[0]
    outs = []
    for i in range(NUM_LAYERS):
        xi = x[:, LAYER_BOUNDARIES[i]:LAYER_BOUNDARIES[i + 1]].reshape(B, LAY_ALPHAS[i], RDIMS[i])
        oi = jnp.einsum("bar,dr->bad", xi, enc_weights[i])
        if LAY_ALPHAS[i] == 1:
            oi = jnp.repeat(oi, ALPHA_OUT, axis=1) / ALPHA_OUT
        outs.append(oi)
    return jnp.stack(outs, axis=1)[:, None]


if __name__ == "__main__":
    key = jax.random.PRNGKey(0)
    k_x, k_x2, *k_noise = jax.random.split(key, 2 + NUM_LAYERS)

    # deterministic "trainable" encoder weights: geometric init + eps * noise
    w_mats = geom_weight_mats()
    enc_weights = [
        jnp.asarray(w_mats[i]) + EPS * jax.random.normal(k_noise[i], w_mats[i].shape, jnp.float32)
        for i in range(NUM_LAYERS)
    ]
    w_big = build_fused_weight(enc_weights)   # built once per weight update

    # -- small demo shape --
    n_shower = 8
    x = jax.random.uniform(k_x, (n_shower, N_VOX), jnp.float32)
    out = jax.block_until_ready(nn_converter_enc(x, w_big))
    ref = reference_enc(x, enc_weights)
    assert out.shape == (n_shower, 1, NUM_LAYERS, ALPHA_OUT, DIM_R_OUT)
    assert jnp.allclose(out, ref, atol=1e-5, rtol=1e-5)

    # -- second check: B not a multiple of the row tile, exercising Pallas'
    #    masked partial trailing block (replaces the old jnp.pad + out[:B] copies).
    n2 = 200
    x2 = jax.random.uniform(k_x2, (n2, N_VOX), jnp.float32)
    out2 = jax.block_until_ready(nn_converter_enc(x2, w_big))
    ref2 = reference_enc(x2, enc_weights)
    assert out2.shape == (n2, 1, NUM_LAYERS, ALPHA_OUT, DIM_R_OUT)
    assert jnp.allclose(out2, ref2, atol=1e-5, rtol=1e-5)

    # TODO(synk): NNConverter.dec / GeomConverter.unreshape (pinv-initialized decoder
    # path) is not exercised by forward() and is not implemented.
    print("KERNEL_OK")
</pallas_src>

<mosaic_0001>
module attributes {stable_mosaic.version = 11 : i64} {
  func.func @fused_enc_kernel(%arg0: i32, %arg1: memref<8x31xf32, #tpu.memory_space<vmem>>, %arg2: memref<31x60xf32, #tpu.memory_space<vmem>>, %arg3: memref<8x60xf32, #tpu.memory_space<vmem>>) attributes {dimension_semantics = [#tpu.dimension_semantics<parallel>], iteration_bounds = array<i64: 1>, scalar_prefetch = 0 : i64, scratch_operands = 0 : i64, tpu.core_type = #tpu.core_type<tc>, window_params = [{transform_indices = @transform_0, window_bounds = array<i64: 8, 31>}, {pipeline_mode = #tpu.pipeline_mode<synchronous>, transform_indices = @transform_1, window_bounds = array<i64: 31, 60>}, {transform_indices = @transform_2, window_bounds = array<i64: 8, 60>}]} {
    %c0 = arith.constant 0 : index
    %c0_0 = arith.constant 0 : index
    %0 = vector.load %arg1[%c0, %c0_0] : memref<8x31xf32, #tpu.memory_space<vmem>>, vector<8x31xf32>
    %c0_1 = arith.constant 0 : index
    %c0_2 = arith.constant 0 : index
    %1 = vector.load %arg2[%c0_1, %c0_2] : memref<31x60xf32, #tpu.memory_space<vmem>>, vector<31x60xf32>
    %cst = arith.constant dense<0.000000e+00> : vector<8x60xf32>
    %2 = tpu.matmul %0, %1, %cst {dimension_numbers = #tpu.dot_dimension_numbers<[1], [0], [0], [1], [0, 0, 1, 1], [], []>} : vector<8x31xf32>, vector<31x60xf32>, vector<8x60xf32> -> vector<8x60xf32>
    %c0_3 = arith.constant 0 : index
    %c0_4 = arith.constant 0 : index
    %3 = vector.load %arg3[%c0_3, %c0_4] : memref<8x60xf32, #tpu.memory_space<vmem>>, vector<8x60xf32>
    tpu.vector_store %arg3[%c0_3, %c0_4], %2 {strides = array<i32>} : memref<8x60xf32, #tpu.memory_space<vmem>>, vector<8x60xf32>,
    return
  }
  func.func @transform_0(%arg0: i32) -> (i32, i32) {
    %c0_i32 = arith.constant 0 : i32
    %c0_i32_0 = arith.constant 0 : i32
    return %arg0, %c0_i32 : i32, i32
  }
  func.func @transform_1(%arg0: i32) -> (i32, i32) {
    %c0_i32 = arith.constant 0 : i32
    %c0_i32_0 = arith.constant 0 : i32
    %c0_i32_1 = arith.constant 0 : i32
    return %c0_i32, %c0_i32_0 : i32, i32
  }
  func.func @transform_2(%arg0: i32) -> (i32, i32) {
    %c0_i32 = arith.constant 0 : i32
    %c0_i32_0 = arith.constant 0 : i32
    return %arg0, %c0_i32 : i32, i32
  }
}

</mosaic_0001>

<llo_original>
// kernel: tpu_custom_call.1
$region0: #{tpu_custom_call.1}
  #allocation0 [shape = 'u32[]', space=smem, size = 0x4, offset = 0x4, fixed_abs, tag = 'smem constant byte address 0x4 - core index']
  #allocation1 [shape = 'u32[72,128]{1,0:T(1,128)}', space=vmem, size = 0x9000, scoped, tag = 'internal scratch']
  %s0 = inlined_call_operand.hbm [shape: f32[8,31], index: 0, kind: input, shape index: {}]
  %s1 = inlined_call_operand.hbm [shape: f32[31,60], index: 1, kind: input, shape index: {}]
  %s2 = inlined_call_operand.hbm [shape: f32[8,60], index: 2, kind: output, shape index: {}]
  %s3 = sld [smem:[#allocation0]]
  $region26: #{tpu_custom_call.1} parent=0
    _
  %s5 = ssub.s32 1, %s3
  %s6 = scalar_select 0, %s5, %s3
  $region1: #{tpu_custom_call.1} parent=0
    #allocation2 [shape = 'u8[4096]{0}', space=vmem, size = 0x1000, scoped, tag = 'input window, operand 0, single buffered']
    #allocation3 [shape = 's32[1]{0}', space=sflag, size = 0x4, scoped, tag = 'scoped memory for tpu_custom_call.1']
    #allocation4 [shape = 's32[1]{0}', space=sflag, size = 0x4, scoped, tag = 'scoped memory for tpu_custom_call.1']
    #allocation5 [shape = 'u8[16384]{0}', space=vmem, size = 0x4000, scoped, tag = 'input window, operand 1, single buffered']
    #allocation6 [shape = 's32[1]{0}', space=sflag, size = 0x4, scoped, tag = 'scoped memory for tpu_custom_call.1']
    #allocation7 [shape = 'u8[4096]{0}', space=vmem, size = 0x1000, scoped, tag = 'output window, operand 0, single buffered']
    %7 = vsyncpa [#allocation3], 0
    %8 = vsyncpa [#allocation6], 0
    %9 = vsyncpa [#allocation4], 0
    // Predicated region
    $region2: #{tpu_custom_call.1} parent=1 // pred_check
      _
    $region3: #{tpu_custom_call.1} parent=1 // pred_check_branch
      %11 = sbr.rel (0) target = $region5
    $region4: #{tpu_custom_call.1} parent=1 // pred_region
      %13 = vsyncadd [#allocation3], 0
      %s15 = sshll.u32 %s0, 4
      %s16 = int_to_ptr.hbm [resolvable:$true] %s15
      %s17 = sshll.u32 [#allocation2], 4
      %s18 = int_to_ptr.vmem [resolvable:$true] %s17
      %20 = dma.hbm_to_vmem [thread:$0]  %s16, 128, %s18, [#allocation3]
    $region5: #{tpu_custom_call.1} parent=1 // pred_fallthru
      _
    // Predicated region
    $region6: #{tpu_custom_call.1} parent=1 // pred_check
      _
    $region7: #{tpu_custom_call.1} parent=1 // pred_check_branch
      %22 = sbr.rel (0) target = $region9
    $region8: #{tpu_custom_call.1} parent=1 // pred_region
      %24 = vsyncadd [#allocation6], 0
      %s25 = sshll.u32 %s1, 4
      %s26 = int_to_ptr.hbm [resolvable:$true] %s25
      %s27 = sshll.u32 [#allocation5], 4
      %s28 = int_to_ptr.vmem [resolvable:$true] %s27
      %33 = dma.hbm_to_vmem [thread:$0]  %s26, 512, %s28, [#allocation6], 128, 128, 8
    $region9: #{tpu_custom_call.1} parent=1 // pred_fallthru
      _
    // Predicated region
    $region10: #{tpu_custom_call.1} parent=1 // pred_check
      _
    $region11: #{tpu_custom_call.1} parent=1 // pred_check_branch
      %35 = sbr.rel (0) target = $region13
    $region12: #{tpu_custom_call.1} parent=1 // pred_region
      %37 = dma.done [#allocation3], 128
    $region13: #{tpu_custom_call.1} parent=1 // pred_fallthru
      _
    // Predicated region
    $region14: #{tpu_custom_call.1} parent=1 // pred_check
      _
    $region15: #{tpu_custom_call.1} parent=1 // pred_check_branch
      %39 = sbr.rel (0) target = $region17
    $region16: #{tpu_custom_call.1} parent=1 // pred_region
      %41 = dma.done [#allocation6], 512
    $region17: #{tpu_custom_call.1} parent=1 // pred_fallthru
      _
    %v42 = vld [vmem:[#allocation2] sm:$0xff]
    %v43 = vld [vmem:[#allocation5] sm:$0xff]
    %v44 = vld [vmem:[#allocation5 + $0x8] sm:$0xff]
    %v45 = vld [vmem:[#allocation5 + $0x10] sm:$0xff]
    %v46 = vld [vmem:[#allocation5 + $0x18] sm:$0x7f]
    %vm47 = vcmask 252928
    %v49 = vsel %vm47, %v42, 0
    %vm51 = vcmask 1046528
    %v53 = vsel %vm51, %v46, 0
    %55 = vmatpush.msra.mxu0 0.0
    %56 = vmatpush.msra.mxu0 0.0
    %57 = vmatpush.msra.mxu0 0.0
    %58 = vmatpush.msra.mxu0 0.0
    %59 = vmatpush.msra.mxu0 0.0
    %60 = vmatpush.msra.mxu0 0.0
    %61 = vmatpush.msra.mxu0 0.0
    %62 = vmatpush.msra.mxu0 0.0
    %63 = vmatpush.msra.mxu0 0.0
    %64 = vmatpush.msra.mxu0 0.0
    %65 = vmatpush.msra.mxu0 0.0
    %66 = vmatpush.msra.mxu0 0.0
    %67 = vmatpush.msra.mxu0 %v53
    %68 = vmatpush.msra.mxu0 %v45
    %69 = vmatpush.msra.mxu0 %v44
    %70 = vmatpush.msra.mxu0 %v43
    %71 = vmatmul.f32.gmra.mxu0 %v49
    %v72 = vpop.f32.mrf.mxu0
    %v73 = vadd.f32 0.0, %v72
    %74 = vdwg.mxu0
    %vm75 = vcmask 490496
    %76 = vst.msk [vmem:[#allocation7] sm:$0xff] %vm75, %v73
    // Predicated region
    $region18: #{tpu_custom_call.1} parent=1 // pred_check
      _
    $region19: #{tpu_custom_call.1} parent=1 // pred_check_branch
      %78 = sbr.rel (0) target = $region21
    $region20: #{tpu_custom_call.1} parent=1 // pred_region
      %80 = vsyncadd [#allocation4], 0
      %s82 = sshll.u32 [#allocation7], 4
      %s83 = int_to_ptr.vmem [resolvable:$true] %s82
      %s84 = sshll.u32 %s2, 4
      %s85 = int_to_ptr.hbm [resolvable:$true] %s84
      %87 = dma.vmem_to_hbm [thread:$0]  %s83, 128, %s85, [#allocation4]
    $region21: #{tpu_custom_call.1} parent=1 // pred_fallthru
      _
    // Predicated region
    $region22: #{tpu_custom_call.1} parent=1 // pred_check
      _
    $region23: #{tpu_custom_call.1} parent=1 // pred_check_branch
      %89 = sbr.rel (0) target = $region25
    $region24: #{tpu_custom_call.1} parent=1 // pred_region
      %91 = dma.done [#allocation4], 128
    $region25: #{tpu_custom_call.1} parent=1 // pred_fallthru
      _
    %92 = vsyncpa [#allocation3], 1
    %93 = vsyncpa [#allocation6], 1
    %94 = vsyncpa [#allocation4], 1

</llo_original>
